<compile_context>
chip_gen: v6e
topology: v6e:2x2x1
jax: 0.10.0
libtpu: 0.0.40
codegen_flags: <defaults>
</compile_context>

<pallas_src>
import functools

import jax
import jax.numpy as jnp
from jax import lax
from jax.experimental import pallas as pl
from jax.experimental.pallas import tpu as pltpu


def _round_up(x, m):
    return (x + m - 1) // m * m


def _pow2_floor(x):
    x = max(int(x), 1)
    return 1 << (x.bit_length() - 1)


def _simple_shader_kernel(bg_r, bg_g, bg_b, sub_p,
                          p2f_ref, bary_ref, fc_ref, out_ref):
    # p2f_ref : (1, TP)   int32   pix_to_face (k=0), pixels on the lane axis
    # bary_ref: (3, TP)   float32 barycentric coords (k=0), vertex-major rows
    # fc_ref  : (9, Fp)   float32 packed face colors, row = 3*vertex + channel
    # out_ref : (4, TP)   float32 RGBA, pixels on the lane axis
    f_pad = fc_ref.shape[1]
    tp = out_ref.shape[1]
    n_sub = tp // sub_p

    # Loop-invariant operands, hoisted once per grid step.  (A grid-persistent
    # scratch iota initialised under program_id == 0 would be unsafe with the
    # "parallel" megacore split, so it is regenerated per step -- negligible
    # relative to n_sub sub-tiles of work.)
    fc = fc_ref[...]                                                # (9, Fp)
    face_row = lax.broadcasted_iota(jnp.int32, (f_pad, sub_p), 0)

    # Statically-unrolled sub-tile loop: big DMA tile, bounded compute temps.
    for s in range(n_sub):
        lo, hi = s * sub_p, (s + 1) * sub_p

        fid = p2f_ref[0:1, lo:hi]                                   # (1, SUB)
        is_fg = fid >= 0
        fid_safe = jnp.where(is_fg, fid, 0)

        # Gather-free face gather on the MXU: (9, Fp) @ (Fp, SUB) -> (9, SUB)
        onehot = (face_row == fid_safe).astype(jnp.float32)
        g = jnp.dot(fc, onehot, preferred_element_type=jnp.float32)

        # Barycentric interpolation on the VPU.
        bary = bary_ref[:, lo:hi]                                   # (3, SUB)
        texel = (bary[0:1] * g[0:3]
                 + bary[1:2] * g[3:6]
                 + bary[2:3] * g[6:9])                              # (3, SUB)

        # Hard RGB blend; one lane-dense (4, SUB) store per sub-tile.
        r = jnp.where(is_fg, texel[0:1], bg_r)
        gg = jnp.where(is_fg, texel[1:2], bg_g)
        bb = jnp.where(is_fg, texel[2:3], bg_b)
        alpha = is_fg.astype(jnp.float32)
        out_ref[:, lo:hi] = jnp.concatenate([r, gg, bb, alpha], axis=0)


def simple_shader(pix_to_face, bary_coords, face_colors,
                  background_color=(1.0, 1.0, 1.0), *, tile_pixels=32768):
    """Pallas implementation of SimpleShader.forward (TexturesVertex path).

    pix_to_face : (N, H, W, K) int32
    bary_coords : (N, H, W, K, 3) float32
    face_colors : (F, 3, 3) float32 (per-face, per-vertex RGB == mesh texture)
    returns     : (N, H, W, 4) float32 RGBA image
    """
    N, H, W, K = pix_to_face.shape
    F = face_colors.shape[0]
    P = N * H * W
    f_pad = _round_up(F, 128)

    # ---- generation-aware sizing -------------------------------------------
    try:
        vmem_cap = int(pltpu.get_tpu_info().vmem_capacity_bytes)
    except Exception:
        vmem_cap = 64 << 20                       # conservative (v7x physical)

    # Compute sub-tile: bounds the (F_pad, SUB) one-hot + iota temporaries.
    temp_budget = min(4 << 20, vmem_cap // 16)
    sub_p = max(128, min(4096, _pow2_floor(temp_budget // (8 * f_pad))))

    # DMA tile = n_sub statically-unrolled sub-tiles (n_sub bounded so the
    # unrolled kernel stays small).  Decouples DMA size from compute temps.
    desired = max(128, pl.next_power_of_2(int(tile_pixels)))
    sub_p = min(sub_p, desired)
    n_sub = max(1, min(32, desired // sub_p))
    tile_p = n_sub * sub_p

    # Never use a tile (much) larger than the problem itself.
    p_cap = max(128, pl.next_power_of_2(P))
    if tile_p > p_cap:
        tile_p = p_cap
        sub_p = min(sub_p, tile_p)
        n_sub = tile_p // sub_p

    # v7x: keep >=2 grid steps for the two-core "parallel" split, but never at
    # the cost of tiles below ~8K pixels (single-core v5e/v6e gain nothing).
    while tile_p > 8192 and pl.cdiv(P, tile_p) < 2:
        n_sub = max(1, n_sub // 2)
        tile_p = n_sub * sub_p

    grid = pl.cdiv(P, tile_p)

    # Explicit VMEM limit (v5e's default scoped limit is only 16 MiB; v7x has
    # only 64 MiB physical) -- computed need plus generous headroom.
    block_bytes = 2 * 3 * (8 * tile_p * 4)        # double-buffered p2f/bary/out
    fc_bytes = 2 * (16 * f_pad * 4)               # resident packed color table
    temp_bytes = 2 * (4 * f_pad * sub_p) + 64 * sub_p * 4
    need = block_bytes + fc_bytes + temp_bytes
    vmem_limit = int(min(0.9 * vmem_cap, max(need + (32 << 20), 48 << 20)))

    # ---- lane-dense operands (pixels on the lane axis) ----------------------
    # Only k = 0 is consumed by hard_rgb_blend.  Slice / flatten / transpose
    # fuse into one XLA pass per operand under jit; no jnp.pad pass is needed
    # because partial edge blocks are masked by Pallas.
    p2f_row = pix_to_face[..., 0].reshape(1, P).astype(jnp.int32)         # (1, P)
    bary_t = bary_coords[..., 0, :].reshape(P, 3).astype(jnp.float32).T   # (3, P)

    # Packed face-color table (9, F_pad): row = 3*vertex + channel.
    fc9 = face_colors.reshape(F, 9).astype(jnp.float32).T                 # (9, F)
    if f_pad != F:
        fc9 = jnp.pad(fc9, ((0, 0), (0, f_pad - F)))

    bg = tuple(float(c) for c in background_color)
    kernel = functools.partial(_simple_shader_kernel, bg[0], bg[1], bg[2], sub_p)

    out = pl.pallas_call(
        kernel,
        out_shape=jax.ShapeDtypeStruct((4, P), jnp.float32),
        grid_spec=pltpu.PrefetchScalarGridSpec(
            num_scalar_prefetch=0,
            grid=(grid,),
            in_specs=[
                pl.BlockSpec((1, tile_p), lambda i: (0, i)),
                pl.BlockSpec((3, tile_p), lambda i: (0, i)),
                pl.BlockSpec((9, f_pad), lambda i: (0, 0)),   # resident table
            ],
            out_specs=pl.BlockSpec((4, tile_p), lambda i: (0, i)),
        ),
        compiler_params=pltpu.CompilerParams(
            dimension_semantics=("parallel",),
            vmem_limit_bytes=vmem_limit),
    )(p2f_row, bary_t, fc9)

    # (4, P) -> (N, H, W, 4).  TODO(synk): fold this channel interleave into
    # the kernel's stores to remove the last wrapper-side HBM pass.
    return out.T.reshape(N, H, W, 4)


def _reference(pix_to_face, bary_coords, face_colors, background_color):
    # Pure-JAX reference of sample_textures (TexturesVertex) + hard_rgb_blend.
    fid = pix_to_face[..., 0]
    is_fg = fid >= 0
    fid_safe = jnp.where(is_fg, fid, 0)
    fc = face_colors[fid_safe]                                    # (N,H,W,3,3)
    texel = jnp.einsum('nhwj,nhwjc->nhwc', bary_coords[..., 0, :], fc)
    bg = jnp.asarray(background_color, jnp.float32)
    rgb = jnp.where(is_fg[..., None], texel, bg[None, None, None, :])
    alpha = is_fg.astype(jnp.float32)[..., None]
    return jnp.concatenate([rgb, alpha], axis=-1)


if __name__ == "__main__":
    N, H, W, K, F = 2, 16, 16, 2, 64
    key = jax.random.PRNGKey(0)
    k1, k2, k3 = jax.random.split(key, 3)

    # fragments: pix_to_face (with -1 = background) and barycentric coords.
    pix_to_face = jax.random.randint(k1, (N, H, W, K), -1, F, dtype=jnp.int32)
    bary_raw = jax.random.uniform(k2, (N, H, W, K, 3), jnp.float32, 0.05, 1.0)
    bary_coords = bary_raw / jnp.sum(bary_raw, axis=-1, keepdims=True)

    # meshes texture: per-face per-vertex RGB (deterministic, synthetic).
    face_colors = jax.random.uniform(k3, (F, 3, 3), jnp.float32)

    background = (1.0, 1.0, 1.0)  # BlendParams default background_color

    shader = jax.jit(simple_shader,
                     static_argnames=("background_color", "tile_pixels"))
    images = shader(pix_to_face, bary_coords, face_colors,
                    background_color=background)
    images = jax.block_until_ready(images)

    ref = _reference(pix_to_face, bary_coords, face_colors, background)
    assert images.shape == (N, H, W, 4)
    assert jnp.allclose(images, ref, atol=1e-5, rtol=1e-5)
    print("KERNEL_OK")
</pallas_src>

<mosaic_0001>
module attributes {stable_mosaic.version = 11 : i64} {
  func.func @_simple_shader_kernel(%arg0: i32, %arg1: memref<1x512xi32, #tpu.memory_space<vmem>>, %arg2: memref<3x512xf32, #tpu.memory_space<vmem>>, %arg3: memref<9x128xf32, #tpu.memory_space<vmem>>, %arg4: memref<4x512xf32, #tpu.memory_space<vmem>>) attributes {dimension_semantics = [#tpu.dimension_semantics<parallel>], iteration_bounds = array<i64: 1>, scalar_prefetch = 0 : i64, scratch_operands = 0 : i64, tpu.core_type = #tpu.core_type<tc>, window_params = [{transform_indices = @transform_0, window_bounds = array<i64: 1, 512>}, {transform_indices = @transform_1, window_bounds = array<i64: 3, 512>}, {pipeline_mode = #tpu.pipeline_mode<synchronous>, transform_indices = @transform_2, window_bounds = array<i64: 9, 128>}, {transform_indices = @transform_3, window_bounds = array<i64: 4, 512>}]} {
    %c0 = arith.constant 0 : index
    %c0_0 = arith.constant 0 : index
    %0 = vector.load %arg3[%c0, %c0_0] : memref<9x128xf32, #tpu.memory_space<vmem>>, vector<9x128xf32>
    %1 = tpu.iota {dimensions = array<i32: 0>} : vector<128x512xi32>
    %c0_1 = arith.constant 0 : index
    %c0_2 = arith.constant 0 : index
    %2 = vector.load %arg1[%c0_1, %c0_2] : memref<1x512xi32, #tpu.memory_space<vmem>>, vector<1x512xi32>
    %c0_i32 = arith.constant 0 : i32
    %3 = vector.broadcast %c0_i32 : i32 to vector<1x512xi32>
    %4 = arith.cmpi sge, %2, %3 : vector<1x512xi32>
    %c0_i32_3 = arith.constant 0 : i32
    %5 = vector.broadcast %c0_i32_3 : i32 to vector<1x512xi32>
    %6 = arith.select %4, %2, %5 : vector<1x512xi1>, vector<1x512xi32>
    %7 = vector.broadcast %6 : vector<1x512xi32> to vector<128x512xi32>
    %8 = arith.cmpi eq, %1, %7 : vector<128x512xi32>
    %9 = arith.extui %8 : vector<128x512xi1> to vector<128x512xi32>
    %10 = arith.sitofp %9 : vector<128x512xi32> to vector<128x512xf32>
    %cst = arith.constant dense<0.000000e+00> : vector<9x512xf32>
    %11 = tpu.matmul %0, %10, %cst {dimension_numbers = #tpu.dot_dimension_numbers<[1], [0], [0], [1], [0, 0, 1, 1], [], []>} : vector<9x128xf32>, vector<128x512xf32>, vector<9x512xf32> -> vector<9x512xf32>
    %c0_4 = arith.constant 0 : index
    %c0_5 = arith.constant 0 : index
    %12 = vector.load %arg2[%c0_4, %c0_5] : memref<3x512xf32, #tpu.memory_space<vmem>>, vector<3x512xf32>
    %13 = vector.extract_strided_slice %12 {offsets = [0, 0], sizes = [1, 512], strides = [1, 1]} : vector<3x512xf32> to vector<1x512xf32>
    %14 = vector.extract_strided_slice %11 {offsets = [0, 0], sizes = [3, 512], strides = [1, 1]} : vector<9x512xf32> to vector<3x512xf32>
    %15 = vector.broadcast %13 : vector<1x512xf32> to vector<3x512xf32>
    %16 = arith.mulf %15, %14 : vector<3x512xf32>
    %17 = vector.extract_strided_slice %12 {offsets = [1, 0], sizes = [1, 512], strides = [1, 1]} : vector<3x512xf32> to vector<1x512xf32>
    %18 = vector.extract_strided_slice %11 {offsets = [3, 0], sizes = [3, 512], strides = [1, 1]} : vector<9x512xf32> to vector<3x512xf32>
    %19 = vector.broadcast %17 : vector<1x512xf32> to vector<3x512xf32>
    %20 = arith.mulf %19, %18 : vector<3x512xf32>
    %21 = arith.addf %16, %20 : vector<3x512xf32>
    %22 = vector.extract_strided_slice %12 {offsets = [2, 0], sizes = [1, 512], strides = [1, 1]} : vector<3x512xf32> to vector<1x512xf32>
    %23 = vector.extract_strided_slice %11 {offsets = [6, 0], sizes = [3, 512], strides = [1, 1]} : vector<9x512xf32> to vector<3x512xf32>
    %24 = vector.broadcast %22 : vector<1x512xf32> to vector<3x512xf32>
    %25 = arith.mulf %24, %23 : vector<3x512xf32>
    %26 = arith.addf %21, %25 : vector<3x512xf32>
    %27 = vector.extract_strided_slice %26 {offsets = [0, 0], sizes = [1, 512], strides = [1, 1]} : vector<3x512xf32> to vector<1x512xf32>
    %cst_6 = arith.constant 1.000000e+00 : f32
    %28 = vector.broadcast %cst_6 : f32 to vector<1x512xf32>
    %29 = arith.select %4, %27, %28 : vector<1x512xi1>, vector<1x512xf32>
    %30 = vector.extract_strided_slice %26 {offsets = [1, 0], sizes = [1, 512], strides = [1, 1]} : vector<3x512xf32> to vector<1x512xf32>
    %cst_7 = arith.constant 1.000000e+00 : f32
    %31 = vector.broadcast %cst_7 : f32 to vector<1x512xf32>
    %32 = arith.select %4, %30, %31 : vector<1x512xi1>, vector<1x512xf32>
    %33 = vector.extract_strided_slice %26 {offsets = [2, 0], sizes = [1, 512], strides = [1, 1]} : vector<3x512xf32> to vector<1x512xf32>
    %cst_8 = arith.constant 1.000000e+00 : f32
    %34 = vector.broadcast %cst_8 : f32 to vector<1x512xf32>
    %35 = arith.select %4, %33, %34 : vector<1x512xi1>, vector<1x512xf32>
    %36 = arith.extui %4 : vector<1x512xi1> to vector<1x512xi32>
    %37 = arith.sitofp %36 : vector<1x512xi32> to vector<1x512xf32>
    %38 = tpu.concatenate %29, %32, %35, %37 in 0 : vector<1x512xf32>, vector<1x512xf32>, vector<1x512xf32>, vector<1x512xf32> -> vector<4x512xf32>
    %c0_9 = arith.constant 0 : index
    %c0_10 = arith.constant 0 : index
    %39 = vector.load %arg4[%c0_9, %c0_10] : memref<4x512xf32, #tpu.memory_space<vmem>>, vector<4x512xf32>
    tpu.vector_store %arg4[%c0_9, %c0_10], %38 {strides = array<i32>} : memref<4x512xf32, #tpu.memory_space<vmem>>, vector<4x512xf32>,
    return
  }
  func.func @transform_0(%arg0: i32) -> (i32, i32) {
    %c0_i32 = arith.constant 0 : i32
    %c0_i32_0 = arith.constant 0 : i32
    return %c0_i32, %arg0 : i32, i32
  }
  func.func @transform_1(%arg0: i32) -> (i32, i32) {
    %c0_i32 = arith.constant 0 : i32
    %c0_i32_0 = arith.constant 0 : i32
    return %c0_i32, %arg0 : i32, i32
  }
  func.func @transform_2(%arg0: i32) -> (i32, i32) {
    %c0_i32 = arith.constant 0 : i32
    %c0_i32_0 = arith.constant 0 : i32
    %c0_i32_1 = arith.constant 0 : i32
    return %c0_i32, %c0_i32_0 : i32, i32
  }
  func.func @transform_3(%arg0: i32) -> (i32, i32) {
    %c0_i32 = arith.constant 0 : i32
    %c0_i32_0 = arith.constant 0 : i32
    return %c0_i32, %arg0 : i32, i32
  }
}

</mosaic_0001>

<llo_original>
// kernel: squeeze.2
$region0: #{squeeze.2}
  %s0 = inlined_call_operand.vmem [shape: s32[2,16,16], index: 0, kind: input, shape index: {}]
  %s1 = inlined_call_operand.vmem [shape: s32[1,512], index: 1, kind: output, shape index: {}]
  $region1: #{squeeze.2} parent=0
    #allocation0 [shape = 'u8[16384]{0}', space=vmem, size = 0x4000, scoped, tag = 'scoped mem for output reshape']
    %v2 = vld [vmem:[%s0] ss:$8 sm:$0xf]
    %vm3 = vcmask 130048
    %4 = vst.msk [vmem:[#allocation0] ss:$8 sm:$0xf] %vm3, %v2
    %s5 = scalar_lea.vmem %s0, 7
    %v6 = vld [vmem:[%s5] ss:$8 sm:$0xf]
    %7 = vrot.lane.b32.xlu0 %v6, 112
    %v8 = vpop.permute.xlu0 %7
    %vm9 = vcmask 1048448
    %10 = vst.msk [vmem:[#allocation0] ss:$8 sm:$0xf] %vm9, %v8
    %s11 = scalar_lea.vmem %s0, 6
    %v12 = vld [vmem:[%s11] ss:$8 sm:$0xf]
    %13 = vrot.lane.b32.xlu0 %v12, 96
    %v14 = vpop.permute.xlu0 %13
    %vm15 = vcmask 917248
    %16 = vst.msk [vmem:[#allocation0] ss:$8 sm:$0xf] %vm15, %v14
    %s17 = scalar_lea.vmem %s0, 5
    %v18 = vld [vmem:[%s17] ss:$8 sm:$0xf]
    %19 = vrot.lane.b32.xlu0 %v18, 80
    %v20 = vpop.permute.xlu0 %19
    %vm21 = vcmask 786048
    %22 = vst.msk [vmem:[#allocation0] ss:$8 sm:$0xf] %vm21, %v20
    %s23 = scalar_lea.vmem %s0, 4
    %v24 = vld [vmem:[%s23] ss:$8 sm:$0xf]
    %25 = vrot.lane.b32.xlu0 %v24, 64
    %v26 = vpop.permute.xlu0 %25
    %vm27 = vcmask 654848
    %28 = vst.msk [vmem:[#allocation0] ss:$8 sm:$0xf] %vm27, %v26
    %s29 = scalar_lea.vmem %s0, 3
    %v30 = vld [vmem:[%s29] ss:$8 sm:$0xf]
    %31 = vrot.lane.b32.xlu0 %v30, 48
    %v32 = vpop.permute.xlu0 %31
    %vm33 = vcmask 523648
    %34 = vst.msk [vmem:[#allocation0] ss:$8 sm:$0xf] %vm33, %v32
    %s35 = scalar_lea.vmem %s0, 2
    %v36 = vld [vmem:[%s35] ss:$8 sm:$0xf]
    %37 = vrot.lane.b32.xlu0 %v36, 32
    %v38 = vpop.permute.xlu0 %37
    %vm39 = vcmask 392448
    %40 = vst.msk [vmem:[#allocation0] ss:$8 sm:$0xf] %vm39, %v38
    %s41 = scalar_lea.vmem %s0, 1
    %v42 = vld [vmem:[%s41] ss:$8 sm:$0xf]
    %43 = vrot.lane.b32.xlu0 %v42, 16
    %v44 = vpop.permute.xlu0 %43
    %vm45 = vcmask 261248
    %46 = vst.msk [vmem:[#allocation0] ss:$8 sm:$0xf] %vm45, %v44
    %s48 = sshll.u32 1, 1
    %s49 = ssub.s32 %s48, 1
    %v51 = vld [vmem:[#allocation0] sm:%s49]
    %s52 = sshll.u32 1, 1
    %s53 = ssub.s32 %s52, 1
    %54 = vst [vmem:[%s1] sm:%s53] %v51
    %s55 = scalar_lea.vmem [#allocation0], 8
    %v56 = vld [vmem:[%s55] sm:%s49]
    %s57 = sshll.u32 1, 1
    %s58 = ssub.s32 %s57, 1
    %s59 = scalar_lea.vmem %s1, 1
    %60 = vst [vmem:[%s59] sm:%s58] %v56
    %s61 = scalar_lea.vmem [#allocation0], 16
    %v62 = vld [vmem:[%s61] sm:%s49]
    %s63 = sshll.u32 1, 1
    %s64 = ssub.s32 %s63, 1
    %s65 = smul.addr 1, 2
    %s66 = scalar_lea.vmem %s1, %s65
    %67 = vst [vmem:[%s66] sm:%s64] %v62
    %s68 = scalar_lea.vmem [#allocation0], 24
    %v69 = vld [vmem:[%s68] sm:%s49]
    %s70 = sshll.u32 1, 1
    %s71 = ssub.s32 %s70, 1
    %s72 = smul.addr 1, 3
    %s73 = scalar_lea.vmem %s1, %s72
    %74 = vst [vmem:[%s73] sm:%s71] %v69

// kernel: squeeze.3
$region0: #{squeeze.3}
  %s0 = inlined_call_operand.vmem [shape: f32[2,16,16,1,3], index: 0, kind: input, shape index: {}]
  %s1 = inlined_call_operand.vmem [shape: f32[512,3], index: 1, kind: output, shape index: {}]
  $region1: #{squeeze.3} parent=0
    #allocation0 [shape = 'u8[16384]{0}', space=vmem, size = 0x4000, scoped, tag = 'scoped mem for output reshape']
    %v2 = vld [vmem:[%s0] ss:$8 sm:$0xf]
    %v3 = vld [vmem:[%s0] ss:$8 sm:$0xf0]
    %vm4 = vcmask 1047556
    %v5 = vsel %vm4, %v3, %v2
    %vm6 = vcmask 130048
    %7 = vst.msk [vmem:[#allocation0] ss:$8 sm:$0xf] %vm6, %v5
    %s8 = scalar_lea.vmem [#allocation0], 4294967265
    %9 = vst.msk [vmem:[%s8] ss:$8 sm:$0xf0] %vm6, %v5
    %s10 = scalar_lea.vmem %s0, 64
    %v11 = vld [vmem:[%s10] ss:$8 sm:$0xf]
    %vm12 = vcmask 130048
    %s13 = scalar_lea.vmem [#allocation0], 2
    %14 = vst.msk [vmem:[%s13] ss:$8 sm:$0xf] %vm12, %v11
    %s15 = scalar_lea.vmem %s0, 7
    %v16 = vld [vmem:[%s15] sm:$0x1]
    %s17 = scalar_lea.vmem %s0, 38
    %v18 = vld [vmem:[%s17] sm:$0x2]
    %vm19 = vcmask 1041409
    %v20 = vsel %vm19, %v18, %v16
    %s21 = scalar_lea.vmem %s0, 183
    %s22 = smov 12
    %v23 = vld [vmem:[%s21] ss:$-56 sm:%s22]
    %vm24 = vcmask 1043458
    %v25 = vsel %vm24, %v23, %v20
    %s26 = scalar_lea.vmem %s0, 43
    %v27 = vld [vmem:[%s26] sm:$0x10]
    %vm28 = vcmask 1044484
    %v29 = vsel %vm28, %v27, %v25
    %s30 = scalar_lea.vmem %s0, 359
    %s31 = smov 96
    %v32 = vld [vmem:[%s30] ss:$-56 sm:%s31]
    %vm33 = vcmask 1046533
    %v34 = vsel %vm33, %v32, %v29
    %s35 = scalar_lea.vmem %s0, 48
    %v36 = vld [vmem:[%s35] sm:$0x80]
    %vm37 = vcmask 1047559
    %v38 = vsel %vm37, %v36, %v34
    %39 = vrot.lane.b32.xlu0 %v38, 112
    %v40 = vpop.permute.xlu0 %39
    %vm41 = vcmask 1048448
    %42 = vst.msk [vmem:[#allocation0] sm:$0x7] %vm41, %v40
    %s43 = scalar_lea.vmem [#allocation0], 5
    %44 = vst.msk [vmem:[%s43] sm:$0x38] %vm41, %v40
    %s45 = scalar_lea.vmem [#allocation0], 10
    %46 = vst.msk [vmem:[%s45] sm:$0xc0] %vm41, %v40
    %s47 = scalar_lea.vmem %s0, 87
    %s48 = smov 3
    %v49 = vld [vmem:[%s47] ss:$-56 sm:%s48]
    %s50 = scalar_lea.vmem %s0, 61
    %v51 = vld [vmem:[%s50] sm:$0x4]
    %vm52 = vcmask 1042434
    %v53 = vsel %vm52, %v51, %v49
    %s54 = scalar_lea.vmem %s0, 92
    %v55 = vld [vmem:[%s54] sm:$0x8]
    %vm56 = vcmask 1043459
    %v57 = vsel %vm56, %v55, %v53
    %58 = vrot.lane.b32.xlu0 %v57, 112
    %v59 = vpop.permute.xlu0 %58
    %vm60 = vcmask 1048448
    %s61 = scalar_lea.vmem [#allocation0], 18
    %62 = vst.msk [vmem:[%s61] ss:$6 sm:$0x3] %vm60, %v59
    %s63 = scalar_lea.vmem [#allocation0], 23
    %64 = vst.msk [vmem:[%s63] sm:$0xc] %vm60, %v59
    %s65 = scalar_lea.vmem %s0, 6
    %v66 = vld [vmem:[%s65] sm:$0x1]
    %s67 = scalar_lea.vmem %s0, 37
    %v68 = vld [vmem:[%s67] sm:$0x2]
    %vm69 = vcmask 1041409
    %v70 = vsel %vm69, %v68, %v66
    %s71 = scalar_lea.vmem %s0, 182
    %s72 = smov 12
    %v73 = vld [vmem:[%s71] ss:$-56 sm:%s72]
    %vm74 = vcmask 1043458
    %v75 = vsel %vm74, %v73, %v70
    %s76 = scalar_lea.vmem %s0, 42
    %v77 = vld [vmem:[%s76] sm:$0x10]
    %vm78 = vcmask 1044484
    %v79 = vsel %vm78, %v77, %v75
    %s80 = scalar_lea.vmem %s0, 358
    %s81 = smov 96
    %v82 = vld [vmem:[%s80] ss:$-56 sm:%s81]
    %vm83 = vcmask 1046533
    %v84 = vsel %vm83, %v82, %v79
    %s85 = scalar_lea.vmem %s0, 47
    %v86 = vld [vmem:[%s85] sm:$0x80]
    %vm87 = vcmask 1047559
    %v88 = vsel %vm87, %v86, %v84
    %89 = vrot.lane.b32.xlu0 %v88, 96
    %v90 = vpop.permute.xlu0 %89
    %vm91 = vcmask 917248
    %92 = vst.msk [vmem:[#allocation0] sm:$0x7] %vm91, %v90
    %s93 = scalar_lea.vmem [#allocation0], 5
    %94 = vst.msk [vmem:[%s93] sm:$0x38] %vm91, %v90
    %s95 = scalar_lea.vmem [#allocation0], 10
    %96 = vst.msk [vmem:[%s95] sm:$0xc0] %vm91, %v90
    %s97 = scalar_lea.vmem %s0, 86
    %s98 = smov 3
    %v99 = vld [vmem:[%s97] ss:$-56 sm:%s98]
    %s100 = scalar_lea.vmem %s0, 60
    %v101 = vld [vmem:[%s100] sm:$0x4]
    %vm102 = vcmask 1042434
    %v103 = vsel %vm102, %v101, %v99
    %s104 = scalar_lea.vmem %s0, 91
    %v105 = vld [vmem:[%s104] sm:$0x8]
    %vm106 = vcmask 1043459
    %v107 = vsel %vm106, %v105, %v103
    %108 = vrot.lane.b32.xlu0 %v107, 96
    %v109 = vpop.permute.xlu0 %108
    %vm110 = vcmask 917248
    %s111 = scalar_lea.vmem [#allocation0], 18
    %112 = vst.msk [vmem:[%s111] ss:$6 sm:$0x3] %vm110, %v109
    %s113 = scalar_lea.vmem [#allocation0], 23
    %114 = vst.msk [vmem:[%s113] sm:$0xc] %vm110, %v109
    %s115 = scalar_lea.vmem %s0, 5
    %v116 = vld [vmem:[%s115] sm:$0x1]
    %s117 = scalar_lea.vmem %s0, 36
    %v118 = vld [vmem:[%s117] sm:$0x2]
    %vm119 = vcmask 1041409
    %v120 = vsel %vm119, %v118, %v116
    %s121 = scalar_lea.vmem %s0, 181
    %s122 = smov 12
    %v123 = vld [vmem:[%s121] ss:$-56 sm:%s122]
    %vm124 = vcmask 1043458
    %v125 = vsel %vm124, %v123, %v120
    %s126 = scalar_lea.vmem %s0, 41
    %v127 = vld [vmem:[%s126] sm:$0x10]
    %vm128 = vcmask 1044484
    %v129 = vsel %vm128, %v127, %v125
    %s130 = scalar_lea.vmem %s0, 357
    %s131 = smov 96
    %v132 = vld [vmem:[%s130] ss:$-56 sm:%s131]
    %vm133 = vcmask 1046533
    %v134 = vsel %vm133, %v132, %v129
    %s135 = scalar_lea.vmem %s0, 46
    %v136 = vld [vmem:[%s135] sm:$0x80]
    %vm137 = vcmask 1047559
    %v138 = vsel %vm137, %v136, %v134
    %139 = vrot.lane.b32.xlu0 %v138, 80
    %v140 = vpop.permute.xlu0 %139
    %vm141 = vcmask 786048
    %142 = vst.msk [vmem:[#allocation0] sm:$0x7] %vm141, %v140
    %s143 = scalar_lea.vmem [#allocation0], 5
    %144 = vst.msk [vmem:[%s143] sm:$0x38] %vm141, %v140
    %s145 = scalar_lea.vmem [#allocation0], 10
    %146 = vst.msk [vmem:[%s145] sm:$0xc0] %vm141, %v140
    %s147 = scalar_lea.vmem %s0, 85
    %s148 = smov 3
    %v149 = vld [vmem:[%s147] ss:$-56 sm:%s148]
    %s150 = scalar_lea.vmem %s0, 59
    %v151 = vld [vmem:[%s150] sm:$0x4]
    %vm152 = vcmask 1042434
    %v153 = vsel %vm152, %v151, %v149
    %s154 = scalar_lea.vmem %s0, 90
    %v155 = vld [vmem:[%s154] sm:$0x8]
    %vm156 = vcmask 1043459
    %v157 = vsel %vm156, %v155, %v153
    %158 = vrot.lane.b32.xlu0 %v157, 80
    %v159 = vpop.permute.xlu0 %158
    %vm160 = vcmask 786048
    %s161 = scalar_lea.vmem [#allocation0], 18
    %162 = vst.msk [vmem:[%s161] ss:$6 sm:$0x3] %vm160, %v159
    %s163 = scalar_lea.vmem [#allocation0], 23
    %164 = vst.msk [vmem:[%s163] sm:$0xc] %vm160, %v159
    %s165 = scalar_lea.vmem %s0, 4
    %v166 = vld [vmem:[%s165] sm:$0x1]
    %s167 = scalar_lea.vmem %s0, 35
    %v168 = vld [vmem:[%s167] sm:$0x2]
    %vm169 = vcmask 1041409
    %v170 = vsel %vm169, %v168, %v166
    %s171 = scalar_lea.vmem %s0, 180
    %s172 = smov 12
    %v173 = vld [vmem:[%s171] ss:$-56 sm:%s172]
    %vm174 = vcmask 1043458
    %v175 = vsel %vm174, %v173, %v170
    %s176 = scalar_lea.vmem %s0, 40
    %v177 = vld [vmem:[%s176] sm:$0x10]
    %vm178 = vcmask 1044484
    %v179 = vsel %vm178, %v177, %v175
    %s180 = scalar_lea.vmem %s0, 356
    %s181 = smov 96
    %v182 = vld [vmem:[%s180] ss:$-56 sm:%s181]
    %vm183 = vcmask 1046533
    %v184 = vsel %vm183, %v182, %v179
    %s185 = scalar_lea.vmem %s0, 45
    %v186 = vld [vmem:[%s185] sm:$0x80]
    %vm187 = vcmask 1047559
    %v188 = vsel %vm187, %v186, %v184
    %189 = vrot.lane.b32.xlu0 %v188, 64
    %v190 = vpop.permute.xlu0 %189
    %vm191 = vcmask 654848
    %192 = vst.msk [vmem:[#allocation0] sm:$0x7] %vm191, %v190
    %s193 = scalar_lea.vmem [#allocation0], 5
    %194 = vst.msk [vmem:[%s193] sm:$0x38] %vm191, %v190
    %s195 = scalar_lea.vmem [#allocation0], 10
    %196 = vst.msk [vmem:[%s195] sm:$0xc0] %vm191, %v190
    %s197 = scalar_lea.vmem %s0, 84
    %s198 = smov 3
    %v199 = vld [vmem:[%s197] ss:$-56 sm:%s198]
    %s200 = scalar_lea.vmem %s0, 58
    %v201 = vld [vmem:[%s200] sm:$0x4]
    %vm202 = vcmask 1042434
    %v203 = vsel %vm202, %v201, %v199
    %s204 = scalar_lea.vmem %s0, 89
    %v205 = vld [vmem:[%s204] sm:$0x8]
    %vm206 = vcmask 1043459
    %v207 = vsel %vm206, %v205, %v203
    %208 = vrot.lane.b32.xlu0 %v207, 64
    %v209 = vpop.permute.xlu0 %208
    %vm210 = vcmask 654848
    %s211 = scalar_lea.vmem [#allocation0], 18
    %212 = vst.msk [vmem:[%s211] ss:$6 sm:$0x3] %vm210, %v209
    %s213 = scalar_lea.vmem [#allocation0], 23
    %214 = vst.msk [vmem:[%s213] sm:$0xc] %vm210, %v209
    %s215 = scalar_lea.vmem %s0, 3
    %v216 = vld [vmem:[%s215] sm:$0x1]
    %s217 = scalar_lea.vmem %s0, 34
    %v218 = vld [vmem:[%s217] sm:$0x2]
    %vm219 = vcmask 1041409
    %v220 = vsel %vm219, %v218, %v216
    %s221 = scalar_lea.vmem %s0, 179
    %s222 = smov 12
    %v223 = vld [vmem:[%s221] ss:$-56 sm:%s222]
    %vm224 = vcmask 1043458
    %v225 = vsel %vm224, %v223, %v220
    %s226 = scalar_lea.vmem %s0, 39
    %v227 = vld [vmem:[%s226] sm:$0x10]
    %vm228 = vcmask 1044484
    %v229 = vsel %vm228, %v227, %v225
    %s230 = scalar_lea.vmem %s0, 355
    %s231 = smov 96
    %v232 = vld [vmem:[%s230] ss:$-56 sm:%s231]
    %vm233 = vcmask 1046533
    %v234 = vsel %vm233, %v232, %v229
    %s235 = scalar_lea.vmem %s0, 44
    %v236 = vld [vmem:[%s235] sm:$0x80]
    %vm237 = vcmask 1047559
    %v238 = vsel %vm237, %v236, %v234
    %239 = vrot.lane.b32.xlu0 %v238, 48
    %v240 = vpop.permute.xlu0 %239
    %vm241 = vcmask 523648
    %242 = vst.msk [vmem:[#allocation0] sm:$0x7] %vm241, %v240
    %s243 = scalar_lea.vmem [#allocation0], 5
    %244 = vst.msk [vmem:[%s243] sm:$0x38] %vm241, %v240
    %s245 = scalar_lea.vmem [#allocation0], 10
    %246 = vst.msk [vmem:[%s245] sm:$0xc0] %vm241, %v240
    %s247 = scalar_lea.vmem %s0, 83
    %s248 = smov 3
    %v249 = vld [vmem:[%s247] ss:$-56 sm:%s248]
    %s250 = scalar_lea.vmem %s0, 57
    %v251 = vld [vmem:[%s250] sm:$0x4]
    %vm252 = vcmask 1042434
    %v253 = vsel %vm252, %v251, %v249
    %s254 = scalar_lea.vmem %s0, 88
    %v255 = vld [vmem:[%s254] sm:$0x8]
    %vm256 = vcmask 1043459
    %v257 = vsel %vm256, %v255, %v253
    %258 = vrot.lane.b32.xlu0 %v257, 48
    %v259 = vpop.permute.xlu0 %258
    %vm260 = vcmask 523648
    %s261 = scalar_lea.vmem [#allocation0], 18
    %262 = vst.msk [vmem:[%s261] ss:$6 sm:$0x3] %vm260, %v259
    %s263 = scalar_lea.vmem [#allocation0], 23
    %264 = vst.msk [vmem:[%s263] sm:$0xc] %vm260, %v259
    %s265 = scalar_lea.vmem %s0, 2
    %v266 = vld [vmem:[%s265] sm:$0x1]
    %s267 = scalar_lea.vmem %s0, 33
    %v268 = vld [vmem:[%s267] sm:$0x2]
    %vm269 = vcmask 1041409
    %v270 = vsel %vm269, %v268, %v266
    %s271 = scalar_lea.vmem %s0, 178
    %s272 = smov 12
    %v273 = vld [vmem:[%s271] ss:$-56 sm:%s272]
    %vm274 = vcmask 1043458
    %v275 = vsel %vm274, %v273, %v270
    %s276 = scalar_lea.vmem %s0, 38
    %v277 = vld [vmem:[%s276] sm:$0x10]
    %vm278 = vcmask 1044484
    %v279 = vsel %vm278, %v277, %v275
    %s280 = scalar_lea.vmem %s0, 354
    %s281 = smov 96
    %v282 = vld [vmem:[%s280] ss:$-56 sm:%s281]
    %vm283 = vcmask 1046533
    %v284 = vsel %vm283, %v282, %v279
    %s285 = scalar_lea.vmem %s0, 43
    %v286 = vld [vmem:[%s285] sm:$0x80]
    %vm287 = vcmask 1047559
    %v288 = vsel %vm287, %v286, %v284
    %289 = vrot.lane.b32.xlu0 %v288, 32
    %v290 = vpop.permute.xlu0 %289
    %vm291 = vcmask 392448
    %292 = vst.msk [vmem:[#allocation0] sm:$0x7] %vm291, %v290
    %s293 = scalar_lea.vmem [#allocation0], 5
    %294 = vst.msk [vmem:[%s293] sm:$0x38] %vm291, %v290
    %s295 = scalar_lea.vmem [#allocation0], 10
    %296 = vst.msk [vmem:[%s295] sm:$0xc0] %vm291, %v290
    %s297 = scalar_lea.vmem %s0, 82
    %s298 = smov 3
    %v299 = vld [vmem:[%s297] ss:$-56 sm:%s298]
    %s300 = scalar_lea.vmem %s0, 56
    %v301 = vld [vmem:[%s300] sm:$0x4]
    %vm302 = vcmask 1042434
    %v303 = vsel %vm302, %v301, %v299
    %s304 = scalar_lea.vmem %s0, 87
    %v305 = vld [vmem:[%s304] sm:$0x8]
    %vm306 = vcmask 1043459
    %v307 = vsel %vm306, %v305, %v303
    %308 = vrot.lane.b32.xlu0 %v307, 32
    %v309 = vpop.permute.xlu0 %308
    %vm310 = vcmask 392448
    %s311 = scalar_lea.vmem [#allocation0], 18
    %312 = vst.msk [vmem:[%s311] ss:$6 sm:$0x3] %vm310, %v309
    %s313 = scalar_lea.vmem [#allocation0], 23
    %314 = vst.msk [vmem:[%s313] sm:$0xc] %vm310, %v309
    %s315 = scalar_lea.vmem %s0, 1
    %v316 = vld [vmem:[%s315] sm:$0x1]
    %s317 = scalar_lea.vmem %s0, 32
    %v318 = vld [vmem:[%s317] sm:$0x2]
    %vm319 = vcmask 1041409
    %v320 = vsel %vm319, %v318, %v316
    %s321 = scalar_lea.vmem %s0, 177
    %s322 = smov 12
    %v323 = vld [vmem:[%s321] ss:$-56 sm:%s322]
    %vm324 = vcmask 1043458
    %v325 = vsel %vm324, %v323, %v320
    %s326 = scalar_lea.vmem %s0, 37
    %v327 = vld [vmem:[%s326] sm:$0x10]
    %vm328 = vcmask 1044484
    %v329 = vsel %vm328, %v327, %v325
    %s330 = scalar_lea.vmem %s0, 353
    %s331 = smov 96
    %v332 = vld [vmem:[%s330] ss:$-56 sm:%s331]
    %vm333 = vcmask 1046533
    %v334 = vsel %vm333, %v332, %v329
    %s335 = scalar_lea.vmem %s0, 42
    %v336 = vld [vmem:[%s335] sm:$0x80]
    %vm337 = vcmask 1047559
    %v338 = vsel %vm337, %v336, %v334
    %339 = vrot.lane.b32.xlu0 %v338, 16
    %v340 = vpop.permute.xlu0 %339
    %vm341 = vcmask 261248
    %342 = vst.msk [vmem:[#allocation0] sm:$0x7] %vm341, %v340
    %s343 = scalar_lea.vmem [#allocation0], 5
    %344 = vst.msk [vmem:[%s343] sm:$0x38] %vm341, %v340
    %s345 = scalar_lea.vmem [#allocation0], 10
    %346 = vst.msk [vmem:[%s345] sm:$0xc0] %vm341, %v340
    %s347 = scalar_lea.vmem %s0, 81
    %s348 = smov 3
    %v349 = vld [vmem:[%s347] ss:$-56 sm:%s348]
    %s350 = scalar_lea.vmem %s0, 55
    %v351 = vld [vmem:[%s350] sm:$0x4]
    %vm352 = vcmask 1042434
    %v353 = vsel %vm352, %v351, %v349
    %s354 = scalar_lea.vmem %s0, 86
    %v355 = vld [vmem:[%s354] sm:$0x8]
    %vm356 = vcmask 1043459
    %v357 = vsel %vm356, %v355, %v353
    %358 = vrot.lane.b32.xlu0 %v357, 16
    %v359 = vpop.permute.xlu0 %358
    %vm360 = vcmask 261248
    %s361 = scalar_lea.vmem [#allocation0], 18
    %362 = vst.msk [vmem:[%s361] ss:$6 sm:$0x3] %vm360, %v359
    %s363 = scalar_lea.vmem [#allocation0], 23
    %364 = vst.msk [vmem:[%s363] sm:$0xc] %vm360, %v359
    %s366 = sshll.u32 1, 4
    %s367 = ssub.s32 %s366, 1
    %v369 = vld [vmem:[#allocation0] sm:%s367]
    %s370 = sshll.u32 1, 4
    %s371 = ssub.s32 %s370, 1
    %372 = vst [vmem:[%s1] sm:%s371] %v369
    %s373 = scalar_lea.vmem [#allocation0], 8
    %v374 = vld [vmem:[%s373] sm:%s367]
    %s375 = sshll.u32 1, 4
    %s376 = ssub.s32 %s375, 1
    %s377 = scalar_lea.vmem %s1, 4
    %378 = vst [vmem:[%s377] sm:%s376] %v374
    %s379 = scalar_lea.vmem [#allocation0], 16
    %v380 = vld [vmem:[%s379] sm:%s367]
    %s381 = sshll.u32 1, 4
    %s382 = ssub.s32 %s381, 1
    %s383 = smul.addr 4, 2
    %s384 = scalar_lea.vmem %s1, %s383
    %385 = vst [vmem:[%s384] sm:%s382] %v380
    %s386 = scalar_lea.vmem [#allocation0], 24
    %v387 = vld [vmem:[%s386] sm:%s367]
    %s388 = sshll.u32 1, 4
    %s389 = ssub.s32 %s388, 1
    %s390 = smul.addr 4, 3
    %s391 = scalar_lea.vmem %s1, %s390
    %392 = vst [vmem:[%s391] sm:%s389] %v387

// kernel: simple_shader.1
$region0: #{simple_shader.1}
  #allocation0 [shape = 'u32[]', space=smem, size = 0x4, offset = 0x4, fixed_abs, tag = 'smem constant byte address 0x4 - core index']
  #allocation1 [shape = 'u32[144,128]{1,0:T(1,128)}', space=vmem, size = 0x12000, scoped, tag = 'internal scratch']
  %s0 = inlined_call_operand.vmem [shape: s32[1,512], index: 0, kind: input, shape index: {}]
  %s1 = inlined_call_operand.vmem [shape: f32[3,512], index: 1, kind: input, shape index: {}]
  %s2 = inlined_call_operand.vmem [shape: f32[9,128], index: 2, kind: input, shape index: {}]
  %s3 = inlined_call_operand.vmem [shape: f32[4,512], index: 3, kind: output, shape index: {}]
  %s4 = sld [smem:[#allocation0]]
  $region22: #{simple_shader.1} parent=0
    _
  %s6 = ssub.s32 1, %s4
  %s7 = scalar_select 0, %s6, %s4
  // Predicated region
  $region2: #{simple_shader.1} parent=0 // pred_check
    _
  $region3: #{simple_shader.1} parent=0 // pred_check_branch
    %9 = sbr.rel (0) target = $region5
  $region4: #{simple_shader.1} parent=0 // pred_region
    _
  $region5: #{simple_shader.1} parent=0 // pred_fallthru
    _
  // Predicated region
  $region6: #{simple_shader.1} parent=0 // pred_check
    _
  $region7: #{simple_shader.1} parent=0 // pred_check_branch
    %11 = sbr.rel (0) target = $region9
  $region8: #{simple_shader.1} parent=0 // pred_region
    _
  $region9: #{simple_shader.1} parent=0 // pred_fallthru
    _
  // Predicated region
  $region10: #{simple_shader.1} parent=0 // pred_check
    _
  $region11: #{simple_shader.1} parent=0 // pred_check_branch
    %13 = sbr.rel (0) target = $region13
  $region12: #{simple_shader.1} parent=0 // pred_region
    _
  $region13: #{simple_shader.1} parent=0 // pred_fallthru
    _
  %v14 = vld [vmem:[%s2] sm:$0xff]
  %v15 = vld [vmem:[%s2 + $0x8] sm:$0x1]
  %v16 = vlaneseq
  %v17 = vshrl.u32 %v16, 7
  %v18 = vadd.s32 %v17, 8
  %v19 = vadd.s32 %v17, 16
  %v20 = vadd.s32 %v17, 24
  %v21 = vadd.s32 %v17, 32
  %v22 = vadd.s32 %v17, 40
  %v23 = vadd.s32 %v17, 48
  %v24 = vadd.s32 %v17, 56
  %v25 = vadd.s32 %v17, 64
  %v26 = vadd.s32 %v17, 72
  %v27 = vadd.s32 %v17, 80
  %v28 = vadd.s32 %v17, 88
  %v29 = vadd.s32 %v17, 96
  %v30 = vadd.s32 %v17, 104
  %v31 = vadd.s32 %v17, 112
  %v32 = vadd.s32 %v17, 120
  %v33 = vld [vmem:[%s0] sm:$0xf]
  %vm34 = vcmp.ge.s32.totalorder %v33, 0
  %v35 = vsel %vm34, %v33, 0
  %v36 = vlaneseq
  %v37 = vshrl.u32 %v36, 7
  %v38 = vsub.s32 0, %v37
  %v39 = vrot.slane %v35, %v38
  %v40 = vlaneseq
  %v41 = vshrl.u32 %v40, 7
  %v42 = vsub.s32 1, %v41
  %v43 = vrot.slane %v35, %v42
  %v44 = vlaneseq
  %v45 = vshrl.u32 %v44, 7
  %v46 = vsub.s32 2, %v45
  %v47 = vrot.slane %v35, %v46
  %v48 = vlaneseq
  %v49 = vshrl.u32 %v48, 7
  %v50 = vsub.s32 3, %v49
  %v51 = vrot.slane %v35, %v50
  %vm52 = vcmp.eq.s32.totalorder %v17, %v39
  %vm53 = vcmp.eq.s32.totalorder %v17, %v43
  %vm54 = vcmp.eq.s32.totalorder %v17, %v47
  %vm55 = vcmp.eq.s32.totalorder %v17, %v51
  %vm56 = vcmp.eq.s32.totalorder %v18, %v39
  %vm57 = vcmp.eq.s32.totalorder %v18, %v43
  %vm58 = vcmp.eq.s32.totalorder %v18, %v47
  %vm59 = vcmp.eq.s32.totalorder %v18, %v51
  %vm60 = vcmp.eq.s32.totalorder %v19, %v39
  %vm61 = vcmp.eq.s32.totalorder %v19, %v43
  %vm62 = vcmp.eq.s32.totalorder %v19, %v47
  %vm63 = vcmp.eq.s32.totalorder %v19, %v51
  %vm64 = vcmp.eq.s32.totalorder %v20, %v39
  %vm65 = vcmp.eq.s32.totalorder %v20, %v43
  %vm66 = vcmp.eq.s32.totalorder %v20, %v47
  %vm67 = vcmp.eq.s32.totalorder %v20, %v51
  %vm68 = vcmp.eq.s32.totalorder %v21, %v39
  %vm69 = vcmp.eq.s32.totalorder %v21, %v43
  %vm70 = vcmp.eq.s32.totalorder %v21, %v47
  %vm71 = vcmp.eq.s32.totalorder %v21, %v51
  %vm72 = vcmp.eq.s32.totalorder %v22, %v39
  %vm73 = vcmp.eq.s32.totalorder %v22, %v43
  %vm74 = vcmp.eq.s32.totalorder %v22, %v47
  %vm75 = vcmp.eq.s32.totalorder %v22, %v51
  %vm76 = vcmp.eq.s32.totalorder %v23, %v39
  %vm77 = vcmp.eq.s32.totalorder %v23, %v43
  %vm78 = vcmp.eq.s32.totalorder %v23, %v47
  %vm79 = vcmp.eq.s32.totalorder %v23, %v51
  %vm80 = vcmp.eq.s32.totalorder %v24, %v39
  %vm81 = vcmp.eq.s32.totalorder %v24, %v43
  %vm82 = vcmp.eq.s32.totalorder %v24, %v47
  %vm83 = vcmp.eq.s32.totalorder %v24, %v51
  %vm84 = vcmp.eq.s32.totalorder %v25, %v39
  %vm85 = vcmp.eq.s32.totalorder %v25, %v43
  %vm86 = vcmp.eq.s32.totalorder %v25, %v47
  %vm87 = vcmp.eq.s32.totalorder %v25, %v51
  %vm88 = vcmp.eq.s32.totalorder %v26, %v39
  %vm89 = vcmp.eq.s32.totalorder %v26, %v43
  %vm90 = vcmp.eq.s32.totalorder %v26, %v47
  %vm91 = vcmp.eq.s32.totalorder %v26, %v51
  %vm92 = vcmp.eq.s32.totalorder %v27, %v39
  %vm93 = vcmp.eq.s32.totalorder %v27, %v43
  %vm94 = vcmp.eq.s32.totalorder %v27, %v47
  %vm95 = vcmp.eq.s32.totalorder %v27, %v51
  %vm96 = vcmp.eq.s32.totalorder %v28, %v39
  %vm97 = vcmp.eq.s32.totalorder %v28, %v43
  %vm98 = vcmp.eq.s32.totalorder %v28, %v47
  %vm99 = vcmp.eq.s32.totalorder %v28, %v51
  %vm100 = vcmp.eq.s32.totalorder %v29, %v39
  %vm101 = vcmp.eq.s32.totalorder %v29, %v43
  %vm102 = vcmp.eq.s32.totalorder %v29, %v47
  %vm103 = vcmp.eq.s32.totalorder %v29, %v51
  %vm104 = vcmp.eq.s32.totalorder %v30, %v39
  %vm105 = vcmp.eq.s32.totalorder %v30, %v43
  %vm106 = vcmp.eq.s32.totalorder %v30, %v47
  %vm107 = vcmp.eq.s32.totalorder %v30, %v51
  %vm108 = vcmp.eq.s32.totalorder %v31, %v39
  %vm109 = vcmp.eq.s32.totalorder %v31, %v43
  %vm110 = vcmp.eq.s32.totalorder %v31, %v47
  %vm111 = vcmp.eq.s32.totalorder %v31, %v51
  %vm112 = vcmp.eq.s32.totalorder %v32, %v39
  %vm113 = vcmp.eq.s32.totalorder %v32, %v43
  %vm114 = vcmp.eq.s32.totalorder %v32, %v47
  %vm115 = vcmp.eq.s32.totalorder %v32, %v51
  %v116 = vsel %vm52, 1, 0
  %v117 = vsel %vm53, 1, 0
  %v118 = vsel %vm54, 1, 0
  %v119 = vsel %vm55, 1, 0
  %v120 = vsel %vm56, 1, 0
  %v121 = vsel %vm57, 1, 0
  %v122 = vsel %vm58, 1, 0
  %v123 = vsel %vm59, 1, 0
  %v124 = vsel %vm60, 1, 0
  %v125 = vsel %vm61, 1, 0
  %v126 = vsel %vm62, 1, 0
  %v127 = vsel %vm63, 1, 0
  %v128 = vsel %vm64, 1, 0
  %v129 = vsel %vm65, 1, 0
  %v130 = vsel %vm66, 1, 0
  %v131 = vsel %vm67, 1, 0
  %v132 = vsel %vm68, 1, 0
  %v133 = vsel %vm69, 1, 0
  %v134 = vsel %vm70, 1, 0
  %v135 = vsel %vm71, 1, 0
  %v136 = vsel %vm72, 1, 0
  %v137 = vsel %vm73, 1, 0
  %v138 = vsel %vm74, 1, 0
  %v139 = vsel %vm75, 1, 0
  %v140 = vsel %vm76, 1, 0
  %v141 = vsel %vm77, 1, 0
  %v142 = vsel %vm78, 1, 0
  %v143 = vsel %vm79, 1, 0
  %v144 = vsel %vm80, 1, 0
  %v145 = vsel %vm81, 1, 0
  %v146 = vsel %vm82, 1, 0
  %v147 = vsel %vm83, 1, 0
  %v148 = vsel %vm84, 1, 0
  %v149 = vsel %vm85, 1, 0
  %v150 = vsel %vm86, 1, 0
  %v151 = vsel %vm87, 1, 0
  %v152 = vsel %vm88, 1, 0
  %v153 = vsel %vm89, 1, 0
  %v154 = vsel %vm90, 1, 0
  %v155 = vsel %vm91, 1, 0
  %v156 = vsel %vm92, 1, 0
  %v157 = vsel %vm93, 1, 0
  %v158 = vsel %vm94, 1, 0
  %v159 = vsel %vm95, 1, 0
  %v160 = vsel %vm96, 1, 0
  %v161 = vsel %vm97, 1, 0
  %v162 = vsel %vm98, 1, 0
  %v163 = vsel %vm99, 1, 0
  %v164 = vsel %vm100, 1, 0
  %v165 = vsel %vm101, 1, 0
  %v166 = vsel %vm102, 1, 0
  %v167 = vsel %vm103, 1, 0
  %v168 = vsel %vm104, 1, 0
  %v169 = vsel %vm105, 1, 0
  %v170 = vsel %vm106, 1, 0
  %v171 = vsel %vm107, 1, 0
  %v172 = vsel %vm108, 1, 0
  %v173 = vsel %vm109, 1, 0
  %v174 = vsel %vm110, 1, 0
  %v175 = vsel %vm111, 1, 0
  %v176 = vsel %vm112, 1, 0
  %v177 = vsel %vm113, 1, 0
  %v178 = vsel %vm114, 1, 0
  %v179 = vsel %vm115, 1, 0
  %v180 = vcvt.s32.f32 %v116
  %v181 = vcvt.s32.f32 %v117
  %v182 = vcvt.s32.f32 %v118
  %v183 = vcvt.s32.f32 %v119
  %v184 = vcvt.s32.f32 %v120
  %v185 = vcvt.s32.f32 %v121
  %v186 = vcvt.s32.f32 %v122
  %v187 = vcvt.s32.f32 %v123
  %v188 = vcvt.s32.f32 %v124
  %v189 = vcvt.s32.f32 %v125
  %v190 = vcvt.s32.f32 %v126
  %v191 = vcvt.s32.f32 %v127
  %v192 = vcvt.s32.f32 %v128
  %v193 = vcvt.s32.f32 %v129
  %v194 = vcvt.s32.f32 %v130
  %v195 = vcvt.s32.f32 %v131
  %v196 = vcvt.s32.f32 %v132
  %v197 = vcvt.s32.f32 %v133
  %v198 = vcvt.s32.f32 %v134
  %v199 = vcvt.s32.f32 %v135
  %v200 = vcvt.s32.f32 %v136
  %v201 = vcvt.s32.f32 %v137
  %v202 = vcvt.s32.f32 %v138
  %v203 = vcvt.s32.f32 %v139
  %v204 = vcvt.s32.f32 %v140
  %v205 = vcvt.s32.f32 %v141
  %v206 = vcvt.s32.f32 %v142
  %v207 = vcvt.s32.f32 %v143
  %v208 = vcvt.s32.f32 %v144
  %v209 = vcvt.s32.f32 %v145
  %v210 = vcvt.s32.f32 %v146
  %v211 = vcvt.s32.f32 %v147
  %v212 = vcvt.s32.f32 %v148
  %v213 = vcvt.s32.f32 %v149
  %v214 = vcvt.s32.f32 %v150
  %v215 = vcvt.s32.f32 %v151
  %v216 = vcvt.s32.f32 %v152
  %v217 = vcvt.s32.f32 %v153
  %v218 = vcvt.s32.f32 %v154
  %v219 = vcvt.s32.f32 %v155
  %v220 = vcvt.s32.f32 %v156
  %v221 = vcvt.s32.f32 %v157
  %v222 = vcvt.s32.f32 %v158
  %v223 = vcvt.s32.f32 %v159
  %v224 = vcvt.s32.f32 %v160
  %v225 = vcvt.s32.f32 %v161
  %v226 = vcvt.s32.f32 %v162
  %v227 = vcvt.s32.f32 %v163
  %v228 = vcvt.s32.f32 %v164
  %v229 = vcvt.s32.f32 %v165
  %v230 = vcvt.s32.f32 %v166
  %v231 = vcvt.s32.f32 %v167
  %v232 = vcvt.s32.f32 %v168
  %v233 = vcvt.s32.f32 %v169
  %v234 = vcvt.s32.f32 %v170
  %v235 = vcvt.s32.f32 %v171
  %v236 = vcvt.s32.f32 %v172
  %v237 = vcvt.s32.f32 %v173
  %v238 = vcvt.s32.f32 %v174
  %v239 = vcvt.s32.f32 %v175
  %v240 = vcvt.s32.f32 %v176
  %v241 = vcvt.s32.f32 %v177
  %v242 = vcvt.s32.f32 %v178
  %v243 = vcvt.s32.f32 %v179
  %244 = vmatprep.subr.mxu0 %v241
  %245 = vmatpush1.msra.mxu0 %v240
  %246 = vmatprep.subr.mxu0 %v237
  %247 = vmatpush1.msra.mxu0 %v236
  %248 = vmatprep.subr.mxu0 %v233
  %249 = vmatpush1.msra.mxu0 %v232
  %250 = vmatprep.subr.mxu0 %v229
  %251 = vmatpush1.msra.mxu0 %v228
  %252 = vmatprep.subr.mxu0 %v225
  %253 = vmatpush1.msra.mxu0 %v224
  %254 = vmatprep.subr.mxu0 %v221
  %255 = vmatpush1.msra.mxu0 %v220
  %256 = vmatprep.subr.mxu0 %v217
  %257 = vmatpush1.msra.mxu0 %v216
  %258 = vmatprep.subr.mxu0 %v213
  %259 = vmatpush1.msra.mxu0 %v212
  %260 = vmatprep.subr.mxu0 %v209
  %261 = vmatpush1.msra.mxu0 %v208
  %262 = vmatprep.subr.mxu0 %v205
  %263 = vmatpush1.msra.mxu0 %v204
  %264 = vmatprep.subr.mxu0 %v201
  %265 = vmatpush1.msra.mxu0 %v200
  %266 = vmatprep.subr.mxu0 %v197
  %267 = vmatpush1.msra.mxu0 %v196
  %268 = vmatprep.subr.mxu0 %v193
  %269 = vmatpush1.msra.mxu0 %v192
  %270 = vmatprep.subr.mxu0 %v189
  %271 = vmatpush1.msra.mxu0 %v188
  %272 = vmatprep.subr.mxu0 %v185
  %273 = vmatpush1.msra.mxu0 %v184
  %274 = vmatprep.subr.mxu0 %v181
  %275 = vmatpush1.msra.mxu0 %v180
  %276 = vmatprep.subr.mxu0 0.0
  %277 = vmatpush2.msra.mxu0 0.0
  %278 = vmatprep.subr.mxu0 0.0
  %279 = vmatpush2.msra.mxu0 0.0
  %280 = vmatprep.subr.mxu0 0.0
  %281 = vmatpush2.msra.mxu0 0.0
  %282 = vmatprep.subr.mxu0 0.0
  %283 = vmatpush2.msra.mxu0 0.0
  %284 = vmatprep.subr.mxu0 0.0
  %285 = vmatpush2.msra.mxu0 0.0
  %286 = vmatprep.subr.mxu0 0.0
  %287 = vmatpush2.msra.mxu0 0.0
  %288 = vmatprep.subr.mxu0 0.0
  %289 = vmatpush2.msra.mxu0 0.0
  %290 = vmatprep.subr.mxu0 0.0
  %291 = vmatpush2.msra.mxu0 0.0
  %292 = vmatprep.subr.mxu0 0.0
  %293 = vmatpush2.msra.mxu0 0.0
  %294 = vmatprep.subr.mxu0 0.0
  %295 = vmatpush2.msra.mxu0 0.0
  %296 = vmatprep.subr.mxu0 0.0
  %297 = vmatpush2.msra.mxu0 0.0
  %298 = vmatprep.subr.mxu0 0.0
  %299 = vmatpush2.msra.mxu0 0.0
  %300 = vmatprep.subr.mxu0 0.0
  %301 = vmatpush2.msra.mxu0 0.0
  %302 = vmatprep.subr.mxu0 0.0
  %303 = vmatpush2.msra.mxu0 0.0
  %304 = vmatprep.subr.mxu0 0.0
  %305 = vmatpush2.msra.mxu0 0.0
  %306 = vmatprep.subr.mxu0 0.0
  %307 = vmatpush2.msra.mxu0 0.0
  %308 = vmatprep.mubr.f32.mxu0 0.0
  %309 = vmatmul.mubr.f32.gmra.mxu0 %v14
  %v310 = vpop.f32.mrf.mxu0
  %v311 = vadd.f32 0.0, %v310
  %v312 = vpop.f32.mrf.mxu0
  %v313 = vadd.f32 0.0, %v312
  %314 = vmatprep.mubr.f32.mxu0 0.0
  %315 = vmatmul.mubr.f32.gmra.mxu0 %v15
  %v316 = vpop.f32.mrf.mxu0
  %v317 = vadd.f32 0.0, %v316
  %v318 = vpop.f32.mrf.mxu0
  %v319 = vadd.f32 0.0, %v318
  %320 = vdwg.mxu0
  %321 = vmatprep.subr.mxu0 %v243
  %322 = vmatpush1.msra.mxu0 %v242
  %323 = vmatprep.subr.mxu0 %v239
  %324 = vmatpush1.msra.mxu0 %v238
  %325 = vmatprep.subr.mxu0 %v235
  %326 = vmatpush1.msra.mxu0 %v234
  %327 = vmatprep.subr.mxu0 %v231
  %328 = vmatpush1.msra.mxu0 %v230
  %329 = vmatprep.subr.mxu0 %v227
  %330 = vmatpush1.msra.mxu0 %v226
  %331 = vmatprep.subr.mxu0 %v223
  %332 = vmatpush1.msra.mxu0 %v222
  %333 = vmatprep.subr.mxu0 %v219
  %334 = vmatpush1.msra.mxu0 %v218
  %335 = vmatprep.subr.mxu0 %v215
  %336 = vmatpush1.msra.mxu0 %v214
  %337 = vmatprep.subr.mxu0 %v211
  %338 = vmatpush1.msra.mxu0 %v210
  %339 = vmatprep.subr.mxu0 %v207
  %340 = vmatpush1.msra.mxu0 %v206
  %341 = vmatprep.subr.mxu0 %v203
  %342 = vmatpush1.msra.mxu0 %v202
  %343 = vmatprep.subr.mxu0 %v199
  %344 = vmatpush1.msra.mxu0 %v198
  %345 = vmatprep.subr.mxu0 %v195
  %346 = vmatpush1.msra.mxu0 %v194
  %347 = vmatprep.subr.mxu0 %v191
  %348 = vmatpush1.msra.mxu0 %v190
  %349 = vmatprep.subr.mxu0 %v187
  %350 = vmatpush1.msra.mxu0 %v186
  %351 = vmatprep.subr.mxu0 %v183
  %352 = vmatpush1.msra.mxu0 %v182
  %353 = vmatprep.subr.mxu0 0.0
  %354 = vmatpush2.msra.mxu0 0.0
  %355 = vmatprep.subr.mxu0 0.0
  %356 = vmatpush2.msra.mxu0 0.0
  %357 = vmatprep.subr.mxu0 0.0
  %358 = vmatpush2.msra.mxu0 0.0
  %359 = vmatprep.subr.mxu0 0.0
  %360 = vmatpush2.msra.mxu0 0.0
  %361 = vmatprep.subr.mxu0 0.0
  %362 = vmatpush2.msra.mxu0 0.0
  %363 = vmatprep.subr.mxu0 0.0
  %364 = vmatpush2.msra.mxu0 0.0
  %365 = vmatprep.subr.mxu0 0.0
  %366 = vmatpush2.msra.mxu0 0.0
  %367 = vmatprep.subr.mxu0 0.0
  %368 = vmatpush2.msra.mxu0 0.0
  %369 = vmatprep.subr.mxu0 0.0
  %370 = vmatpush2.msra.mxu0 0.0
  %371 = vmatprep.subr.mxu0 0.0
  %372 = vmatpush2.msra.mxu0 0.0
  %373 = vmatprep.subr.mxu0 0.0
  %374 = vmatpush2.msra.mxu0 0.0
  %375 = vmatprep.subr.mxu0 0.0
  %376 = vmatpush2.msra.mxu0 0.0
  %377 = vmatprep.subr.mxu0 0.0
  %378 = vmatpush2.msra.mxu0 0.0
  %379 = vmatprep.subr.mxu0 0.0
  %380 = vmatpush2.msra.mxu0 0.0
  %381 = vmatprep.subr.mxu0 0.0
  %382 = vmatpush2.msra.mxu0 0.0
  %383 = vmatprep.subr.mxu0 0.0
  %384 = vmatpush2.msra.mxu0 0.0
  %385 = vmatprep.mubr.f32.mxu0 0.0
  %386 = vmatmul.mubr.f32.gmra.mxu0 %v14
  %v387 = vpop.f32.mrf.mxu0
  %v388 = vadd.f32 0.0, %v387
  %v389 = vpop.f32.mrf.mxu0
  %v390 = vadd.f32 0.0, %v389
  %391 = vmatprep.mubr.f32.mxu0 0.0
  %392 = vmatmul.mubr.f32.gmra.mxu0 %v15
  %v393 = vpop.f32.mrf.mxu0
  %v394 = vadd.f32 0.0, %v393
  %v395 = vpop.f32.mrf.mxu0
  %v396 = vadd.f32 0.0, %v395
  %397 = vdwg.mxu0
  %v398 = vld [vmem:[%s1] sm:$0x77]
  %v399 = vld [vmem:[%s1 + $0x8] sm:$0x77]
  %v402 = vlaneseq
  %v403 = vshrl.u32 %v402, 7
  %v404 = vsub.s32 0, %v403
  %v405 = vrot.slane %v398, %v404
  %v406 = vlaneseq
  %v407 = vshrl.u32 %v406, 7
  %v408 = vsub.s32 4, %v407
  %v409 = vrot.slane %v398, %v408
  %v410 = vlaneseq
  %v411 = vshrl.u32 %v410, 7
  %v412 = vsub.s32 0, %v411
  %v413 = vrot.slane %v399, %v412
  %v414 = vlaneseq
  %v415 = vshrl.u32 %v414, 7
  %v416 = vsub.s32 4, %v415
  %v417 = vrot.slane %v399, %v416
  %v422 = vlaneseq
  %v423 = vshrl.u32 %v422, 7
  %v424 = vsub.s32 0, %v423
  %v425 = vrot.slane %v405, %v424
  %v426 = vlaneseq
  %v427 = vshrl.u32 %v426, 7
  %v428 = vsub.s32 0, %v427
  %v429 = vrot.slane %v409, %v428
  %v430 = vlaneseq
  %v431 = vshrl.u32 %v430, 7
  %v432 = vsub.s32 0, %v431
  %v433 = vrot.slane %v413, %v432
  %v434 = vlaneseq
  %v435 = vshrl.u32 %v434, 7
  %v436 = vsub.s32 0, %v435
  %v437 = vrot.slane %v417, %v436
  %v438 = vmul.f32 %v425, %v311
  %v439 = vmul.f32 %v429, %v313
  %v440 = vmul.f32 %v433, %v388
  %v441 = vmul.f32 %v437, %v390
  %v442 = vlaneseq
  %v443 = vshrl.u32 %v442, 7
  %v444 = vsub.s32 1, %v443
  %v445 = vrot.slane %v398, %v444
  %v446 = vlaneseq
  %v447 = vshrl.u32 %v446, 7
  %v448 = vsub.s32 5, %v447
  %v449 = vrot.slane %v398, %v448
  %v450 = vlaneseq
  %v451 = vshrl.u32 %v450, 7
  %v452 = vsub.s32 1, %v451
  %v453 = vrot.slane %v399, %v452
  %v454 = vlaneseq
  %v455 = vshrl.u32 %v454, 7
  %v456 = vsub.s32 5, %v455
  %v457 = vrot.slane %v399, %v456
  %v462 = vlaneseq
  %v463 = vshrl.u32 %v462, 7
  %v464 = vsub.s32 1, %v463
  %v465 = vrot.slane %v445, %v464
  %v466 = vlaneseq
  %v467 = vshrl.u32 %v466, 7
  %v468 = vsub.s32 1, %v467
  %v469 = vrot.slane %v449, %v468
  %v470 = vlaneseq
  %v471 = vshrl.u32 %v470, 7
  %v472 = vsub.s32 1, %v471
  %v473 = vrot.slane %v453, %v472
  %v474 = vlaneseq
  %v475 = vshrl.u32 %v474, 7
  %v476 = vsub.s32 1, %v475
  %v477 = vrot.slane %v457, %v476
  %v478 = vmul.f32 %v465, %v311
  %v479 = vmul.f32 %v469, %v313
  %v480 = vmul.f32 %v473, %v388
  %v481 = vmul.f32 %v477, %v390
  %v486 = vrot.slane %v478, 3
  %v487 = vrot.slane %v479, 3
  %v488 = vrot.slane %v480, 3
  %v489 = vrot.slane %v481, 3
  %v494 = vadd.f32 %v438, %v486
  %v495 = vadd.f32 %v439, %v487
  %v496 = vadd.f32 %v440, %v488
  %v497 = vadd.f32 %v441, %v489
  %v498 = vlaneseq
  %v499 = vshrl.u32 %v498, 7
  %v500 = vsub.s32 2, %v499
  %v501 = vrot.slane %v398, %v500
  %v502 = vlaneseq
  %v503 = vshrl.u32 %v502, 7
  %v504 = vsub.s32 6, %v503
  %v505 = vrot.slane %v398, %v504
  %v506 = vlaneseq
  %v507 = vshrl.u32 %v506, 7
  %v508 = vsub.s32 2, %v507
  %v509 = vrot.slane %v399, %v508
  %v510 = vlaneseq
  %v511 = vshrl.u32 %v510, 7
  %v512 = vsub.s32 6, %v511
  %v513 = vrot.slane %v399, %v512
  %v518 = vlaneseq
  %v519 = vshrl.u32 %v518, 7
  %v520 = vsub.s32 2, %v519
  %v521 = vrot.slane %v501, %v520
  %v522 = vlaneseq
  %v523 = vshrl.u32 %v522, 7
  %v524 = vsub.s32 2, %v523
  %v525 = vrot.slane %v505, %v524
  %v526 = vlaneseq
  %v527 = vshrl.u32 %v526, 7
  %v528 = vsub.s32 2, %v527
  %v529 = vrot.slane %v509, %v528
  %v530 = vlaneseq
  %v531 = vshrl.u32 %v530, 7
  %v532 = vsub.s32 2, %v531
  %v533 = vrot.slane %v513, %v532
  %v534 = vmul.f32 %v521, %v311
  %v535 = vmul.f32 %v525, %v313
  %v536 = vmul.f32 %v529, %v388
  %v537 = vmul.f32 %v533, %v390
  %v538 = vmul.f32 %v521, %v317
  %v539 = vmul.f32 %v525, %v319
  %v540 = vmul.f32 %v529, %v394
  %v541 = vmul.f32 %v533, %v396
  %vm550 = vcmask 1041408
  %v551 = vrot.slane %v534, 6
  %v552 = vrot.slane %v538, 6
  %v553 = vsel %vm550, %v551, %v552
  %v554 = vrot.slane %v535, 6
  %v555 = vrot.slane %v539, 6
  %v556 = vsel %vm550, %v554, %v555
  %v557 = vrot.slane %v536, 6
  %v558 = vrot.slane %v540, 6
  %v559 = vsel %vm550, %v557, %v558
  %v560 = vrot.slane %v537, 6
  %v561 = vrot.slane %v541, 6
  %v562 = vsel %vm550, %v560, %v561
  %v567 = vadd.f32 %v494, %v553
  %v568 = vadd.f32 %v495, %v556
  %v569 = vadd.f32 %v496, %v559
  %v570 = vadd.f32 %v497, %v562
  %v575 = vcombine.low %v567, %v568
  %v576 = vcombine.low %v569, %v570
  %v578 = vunpack.c.l.s4 1966171168
  %v579 = vunpack.c.0.s8 %v578
  %v580 = vlaneseq
  %v581 = vshrl.u32 %v580, 7
  %v582 = vsub.s32 %v579, %v581
  %v583 = vrot.slane %v575, %v582
  %v585 = vunpack.c.l.s4 1966171168
  %v586 = vunpack.c.0.s8 %v585
  %v587 = vlaneseq
  %v588 = vshrl.u32 %v587, 7
  %v589 = vsub.s32 %v586, %v588
  %v590 = vrot.slane %v576, %v589
  %v591 = vcombine.low %v583, %v590
  %v593 = vunpack.c.l.s4 1966171168
  %v594 = vunpack.c.0.s8 %v593
  %v595 = vlaneseq
  %v596 = vshrl.u32 %v595, 7
  %v597 = vsub.s32 %v594, %v596
  %v598 = vrot.slane %v591, %v597
  %v600 = vsel %vm34, %v598, 1.0
  %v601 = vcombine.high %v583, %v590
  %v603 = vunpack.c.l.s4 1966171168
  %v604 = vunpack.c.0.s8 %v603
  %v605 = vlaneseq
  %v606 = vshrl.u32 %v605, 7
  %v607 = vsub.s32 %v604, %v606
  %v608 = vrot.slane %v601, %v607
  %v610 = vsel %vm34, %v608, 1.0
  %v611 = vcombine.high %v598, %v598
  %v613 = vsel %vm34, %v611, 1.0
  %v614 = vsel %vm34, 1, 0
  %v615 = vcvt.s32.f32 %v614
  %v617 = vlaneseq
  %v618 = vshrl.u32 %v617, 7
  %v619 = vsub.s32 0, %v618
  %v620 = vrot.slane %v600, %v619
  %v621 = vlaneseq
  %v622 = vshrl.u32 %v621, 7
  %v623 = vsub.s32 1, %v622
  %v624 = vrot.slane %v600, %v623
  %v625 = vlaneseq
  %v626 = vshrl.u32 %v625, 7
  %v627 = vsub.s32 2, %v626
  %v628 = vrot.slane %v600, %v627
  %v629 = vlaneseq
  %v630 = vshrl.u32 %v629, 7
  %v631 = vsub.s32 3, %v630
  %v632 = vrot.slane %v600, %v631
  %v638 = vlaneseq
  %v639 = vshrl.u32 %v638, 7
  %v640 = vsub.s32 0, %v639
  %v641 = vrot.slane %v610, %v640
  %v642 = vlaneseq
  %v643 = vshrl.u32 %v642, 7
  %v644 = vsub.s32 1, %v643
  %v645 = vrot.slane %v610, %v644
  %v646 = vlaneseq
  %v647 = vshrl.u32 %v646, 7
  %v648 = vsub.s32 2, %v647
  %v649 = vrot.slane %v610, %v648
  %v650 = vlaneseq
  %v651 = vshrl.u32 %v650, 7
  %v652 = vsub.s32 3, %v651
  %v653 = vrot.slane %v610, %v652
  %v659 = vlaneseq
  %v660 = vshrl.u32 %v659, 7
  %v661 = vsub.s32 0, %v660
  %v662 = vrot.slane %v613, %v661
  %v663 = vlaneseq
  %v664 = vshrl.u32 %v663, 7
  %v665 = vsub.s32 1, %v664
  %v666 = vrot.slane %v613, %v665
  %v667 = vlaneseq
  %v668 = vshrl.u32 %v667, 7
  %v669 = vsub.s32 2, %v668
  %v670 = vrot.slane %v613, %v669
  %v671 = vlaneseq
  %v672 = vshrl.u32 %v671, 7
  %v673 = vsub.s32 3, %v672
  %v674 = vrot.slane %v613, %v673
  %v680 = vlaneseq
  %v681 = vshrl.u32 %v680, 7
  %v682 = vsub.s32 0, %v681
  %v683 = vrot.slane %v615, %v682
  %v684 = vlaneseq
  %v685 = vshrl.u32 %v684, 7
  %v686 = vsub.s32 1, %v685
  %v687 = vrot.slane %v615, %v686
  %v688 = vlaneseq
  %v689 = vshrl.u32 %v688, 7
  %v690 = vsub.s32 2, %v689
  %v691 = vrot.slane %v615, %v690
  %v692 = vlaneseq
  %v693 = vshrl.u32 %v692, 7
  %v694 = vsub.s32 3, %v693
  %v695 = vrot.slane %v615, %v694
  %vm700 = vcmask 1040384
  %v701 = vsel %vm700, %v620, %v641
  %v702 = vsel %vm700, %v624, %v645
  %v703 = vsel %vm700, %v628, %v649
  %v704 = vsel %vm700, %v632, %v653
  %v705 = vsel %vm550, %v701, %v662
  %v706 = vsel %vm550, %v702, %v666
  %v707 = vsel %vm550, %v703, %v670
  %v708 = vsel %vm550, %v704, %v674
  %vm709 = vcmask 1042432
  %v710 = vsel %vm709, %v705, %v683
  %v711 = vsel %vm709, %v706, %v687
  %v712 = vsel %vm709, %v707, %v691
  %v713 = vsel %vm709, %v708, %v695
  %v718 = vcombine.low %v710, %v711
  %v719 = vcombine.low %v712, %v713
  %722 = vst [vmem:[%s3] sm:$0xff] %v718
  %723 = vst [vmem:[%s3 + $0x8] sm:$0xff] %v719
  // Predicated region
  $region14: #{simple_shader.1} parent=0 // pred_check
    _
  $region15: #{simple_shader.1} parent=0 // pred_check_branch
    %725 = sbr.rel (0) target = $region17
  $region16: #{simple_shader.1} parent=0 // pred_region
    _
  $region17: #{simple_shader.1} parent=0 // pred_fallthru
    _
  // Predicated region
  $region18: #{simple_shader.1} parent=0 // pred_check
    _
  $region19: #{simple_shader.1} parent=0 // pred_check_branch
    %727 = sbr.rel (0) target = $region21
  $region20: #{simple_shader.1} parent=0 // pred_region
    _
  $region21: #{simple_shader.1} parent=0 // pred_fallthru
    _

</llo_original>
